<compile_context>
chip_gen: v5e
topology: v5e:2x2
jax: 0.10.0
libtpu: 0.0.40
codegen_flags: <defaults>
</compile_context>

<pallas_src>
import functools

import jax
import jax.numpy as jnp
from jax.experimental import pallas as pl
from jax.experimental.pallas import tpu as pltpu

FEAT = 64  # backbone feature dim the projector expects (sizes[0] == 64)


def _dsbn_barlow_kernel(y_ref, wconv_ref,
                        w1_ref, g1_ref, b1_ref,
                        w2_ref, g2_ref, b2_ref,
                        w3_ref,
                        loss_ref, feat_ref, *,
                        imgs_per_block, n_patches, n_per_view,
                        batch_size, lambd, eps):
    """Tiled backbone stage + (last grid step) projector/DSBN/BarlowTwins loss."""
    i = pl.program_id(0)

    # ---------------- backbone stand-in (pipelined over image blocks) -------
    # TODO(synk): densenet11/21/29/63 definitions are not part of the module;
    # backbone approximated by a PxP patch conv + ReLU + global average pool
    # down to the 64-d feature the projector expects.
    a = jnp.dot(y_ref[...], wconv_ref[...],
                preferred_element_type=jnp.float32)          # [B*P, FEAT] f32
    a = jnp.maximum(a, 0.0)
    pooled = jnp.mean(a.reshape(imgs_per_block, n_patches, FEAT), axis=1)
    row0 = pl.multiple_of(i * imgs_per_block, imgs_per_block)
    feat_ref[pl.ds(row0, imgs_per_block), :] = pooled        # [B, FEAT]

    # ---------------- head: projector + DSBN + loss (last grid step) --------
    @pl.when(i == pl.num_programs(0) - 1)
    def _finalize():
        def batchnorm(x2, gamma=None, beta=None):
            # Training-mode BatchNorm1d with per-view statistics, computed in a
            # single pass: var = E[x^2] - E[x]^2 (biased), eps = 1e-5.
            # TODO(synk): running_mean/running_var tracking not implemented.
            x3 = x2.reshape(2, n_per_view, x2.shape[-1])
            m = jnp.mean(x3, axis=1, keepdims=True)
            m2 = jnp.mean(x3 * x3, axis=1, keepdims=True)
            xhat = ((x3 - m) * jax.lax.rsqrt(m2 - m * m + eps)).reshape(x2.shape)
            if gamma is not None:
                xhat = xhat * gamma + beta                   # [2N,D]*[1,D]+[1,D]
            return xhat

        feats = feat_ref[...]                                # [2N, FEAT] f32
        x = jnp.dot(feats, w1_ref[...], preferred_element_type=jnp.float32)
        x = jnp.maximum(batchnorm(x, g1_ref[...], b1_ref[...]), 0.0)
        x = jnp.dot(x, w2_ref[...], preferred_element_type=jnp.float32)
        x = jnp.maximum(batchnorm(x, g2_ref[...], b2_ref[...]), 0.0)
        x = jnp.dot(x, w3_ref[...], preferred_element_type=jnp.float32)
        z = batchnorm(x)                                     # final DSBN, affine=False
        z1 = z[:n_per_view]
        z2 = z[n_per_view:]

        # cross-correlation c = z1.T @ z2 / batch_size (contract over batch)
        c = jax.lax.dot_general(z1, z2, (((0,), (0,)), ((), ())),
                                preferred_element_type=jnp.float32) / batch_size
        # TODO(synk): torch.distributed.all_reduce(c) — single-device identity.

        d = c.shape[0]
        rows = jax.lax.broadcasted_iota(jnp.int32, (d, d), 0)
        cols = jax.lax.broadcasted_iota(jnp.int32, (d, d), 1)
        eye = rows == cols
        c2 = c * c
        sumsq = jnp.sum(c2)
        diag_sq = jnp.sum(jnp.where(eye, c2, 0.0))
        diag_sum = jnp.sum(jnp.where(eye, c, 0.0))
        on_diag = diag_sq - 2.0 * diag_sum + float(d)        # sum_i (c_ii - 1)^2
        off_diag = sumsq - diag_sq                           # sum_{i!=j} c_ij^2
        loss_ref[0, 0] = on_diag + lambd * off_diag


def dsbn_barlow_twins(y1_nchw, y2_nchw, domain_label, params, *,
                      batch_size, lambd, patch=4, img_block=None):
    n, c, h, w = y1_nchw.shape
    assert h % patch == 0 and w % patch == 0
    n_patches = (h // patch) * (w // patch)
    k = c * patch * patch

    # NCHW -> lane-dense patch rows [N*patches, C*P*P]. This is one fused XLA
    # pass (transpose + bf16 cast + view concat) under jit.
    # TODO(synk): ideally the data pipeline supplies NHWC / pre-patchified
    # tensors so even this single layout pass disappears.
    def patchify(y):
        y = y.reshape(n, c, h // patch, patch, w // patch, patch)
        y = jnp.transpose(y, (0, 2, 4, 1, 3, 5))             # [N, Hp, Wp, C, P, P]
        return y.reshape(n, n_patches, k)

    y = jnp.concatenate([patchify(y1_nchw), patchify(y2_nchw)], axis=0)
    y = y.reshape(2 * n * n_patches, k).astype(jnp.bfloat16)  # [2N*patches, K]

    # DSBN parameter selection: whole batch shares one domain label, as in the
    # TwoInputSequential / DomainSpecificBatchNorm1d forward.
    # TODO(synk): per-sample domain routing for mixed-domain batches.
    dom = domain_label[0]
    g1 = params["dsbn1_gamma"][dom][None, :]
    b1 = params["dsbn1_beta"][dom][None, :]
    g2 = params["dsbn2_gamma"][dom][None, :]
    b2 = params["dsbn2_beta"][dom][None, :]

    if img_block is None:
        # largest image count per grid step whose bf16 input tile is <= ~2 MiB
        budget = max(1, (2 * 1024 * 1024) // (n_patches * k * 2))
        img_block = 1
        for cand in range(1, 2 * n + 1):
            if (2 * n) % cand == 0 and cand <= budget:
                img_block = cand
    assert (2 * n) % img_block == 0
    grid = (2 * n // img_block,)
    rows_per_block = img_block * n_patches

    kernel = functools.partial(
        _dsbn_barlow_kernel,
        imgs_per_block=img_block, n_patches=n_patches, n_per_view=n,
        batch_size=float(batch_size), lambd=float(lambd), eps=1e-5)

    sizes = (params["w1"].shape[1], params["w2"].shape[1], params["w3"].shape[1])
    const = lambda i: (0, 0)
    loss = pl.pallas_call(
        kernel,
        grid=grid,
        out_shape=jax.ShapeDtypeStruct((1, 1), jnp.float32),
        in_specs=[
            pl.BlockSpec((rows_per_block, k), lambda i: (i, 0)),   # image block (bf16)
            pl.BlockSpec((k, FEAT), const),                        # w_conv (bf16)
            pl.BlockSpec((FEAT, sizes[0]), const),                 # w1
            pl.BlockSpec((1, sizes[0]), const),                    # gamma1
            pl.BlockSpec((1, sizes[0]), const),                    # beta1
            pl.BlockSpec((sizes[0], sizes[1]), const),             # w2
            pl.BlockSpec((1, sizes[1]), const),                    # gamma2
            pl.BlockSpec((1, sizes[1]), const),                    # beta2
            pl.BlockSpec((sizes[1], sizes[2]), const),             # w3
        ],
        out_specs=pl.BlockSpec(memory_space=pltpu.MemorySpace.SMEM),
        scratch_shapes=[pltpu.VMEM((2 * n, FEAT), jnp.float32)],
        compiler_params=pltpu.CompilerParams(
            dimension_semantics=("arbitrary",),   # head depends on all blocks
            vmem_limit_bytes=32 * 1024 * 1024),
    )(y, params["w_conv"].astype(jnp.bfloat16),
      params["w1"], g1, b1, params["w2"], g2, b2, params["w3"])
    return loss[0, 0]


def init_params(key, conv_in, proj_sizes, n_domains):
    # sizes = [64] + projector dims, as in the PyTorch __init__
    sizes = [FEAT] + list(proj_sizes)
    ks = jax.random.split(key, 4)
    return {
        "w_conv": jax.random.normal(ks[0], (conv_in, FEAT), jnp.float32)
                  / jnp.sqrt(float(conv_in)),
        "w1": jax.random.normal(ks[1], (sizes[0], sizes[1]), jnp.float32)
              / jnp.sqrt(float(sizes[0])),
        "w2": jax.random.normal(ks[2], (sizes[1], sizes[2]), jnp.float32)
              / jnp.sqrt(float(sizes[1])),
        "w3": jax.random.normal(ks[3], (sizes[2], sizes[3]), jnp.float32)
              / jnp.sqrt(float(sizes[2])),
        # DSBN: one (gamma, beta) pair per domain; PyTorch BN init = ones/zeros
        "dsbn1_gamma": jnp.ones((n_domains, sizes[1]), jnp.float32),
        "dsbn1_beta": jnp.zeros((n_domains, sizes[1]), jnp.float32),
        "dsbn2_gamma": jnp.ones((n_domains, sizes[2]), jnp.float32),
        "dsbn2_beta": jnp.zeros((n_domains, sizes[2]), jnp.float32),
    }


if __name__ == "__main__":
    # args-equivalent settings (small, deterministic)
    N, C_IN, H, W = 8, 4, 16, 16          # batch, in_features, spatial
    PROJECTOR = (32, 32, 32)              # args.projector = "32-32-32"
    N_DOMAINS = 2
    LAMBD = 0.0051
    BATCH_SIZE = N
    PATCH = 4                             # 4x4 patches -> K = C*16 = 64

    key = jax.random.PRNGKey(0)
    k_y1, k_y2, k_p = jax.random.split(key, 3)
    y1 = jax.random.normal(k_y1, (N, C_IN, H, W), jnp.float32)
    y2 = jax.random.normal(k_y2, (N, C_IN, H, W), jnp.float32)
    domain_label = jnp.zeros((N,), jnp.int32)   # whole batch from domain 0

    params = init_params(k_p, C_IN * PATCH * PATCH, PROJECTOR, N_DOMAINS)

    # img_block=8 -> grid=(2,): exercises the pipelined multi-step path.
    fwd = jax.jit(functools.partial(
        dsbn_barlow_twins, batch_size=BATCH_SIZE, lambd=LAMBD,
        patch=PATCH, img_block=8))
    loss = fwd(y1, y2, domain_label, params)
    jax.block_until_ready(loss)
    assert loss.shape == () and bool(jnp.isfinite(loss))
    print("KERNEL_OK")
</pallas_src>

<mosaic_0001>
module attributes {stable_mosaic.version = 11 : i64} {
  func.func @_dsbn_barlow_kernel(%arg0: i32, %arg1: memref<128x64xbf16, #tpu.memory_space<vmem>>, %arg2: memref<64x64xbf16, #tpu.memory_space<vmem>>, %arg3: memref<64x32xf32, #tpu.memory_space<vmem>>, %arg4: memref<1x32xf32, #tpu.memory_space<vmem>>, %arg5: memref<1x32xf32, #tpu.memory_space<vmem>>, %arg6: memref<32x32xf32, #tpu.memory_space<vmem>>, %arg7: memref<1x32xf32, #tpu.memory_space<vmem>>, %arg8: memref<1x32xf32, #tpu.memory_space<vmem>>, %arg9: memref<32x32xf32, #tpu.memory_space<vmem>>, %arg10: memref<1x1xf32, #tpu.memory_space<smem>>, %arg11: memref<16x64xf32, #tpu.memory_space<vmem>>) attributes {dimension_semantics = [#tpu.dimension_semantics<arbitrary>], iteration_bounds = array<i64: 2>, scalar_prefetch = 0 : i64, scratch_operands = 1 : i64, tpu.core_type = #tpu.core_type<tc>, window_params = [{transform_indices = @transform_0, window_bounds = array<i64: 128, 64>}, {pipeline_mode = #tpu.pipeline_mode<synchronous>, transform_indices = @transform_1, window_bounds = array<i64: 64, 64>}, {pipeline_mode = #tpu.pipeline_mode<synchronous>, transform_indices = @transform_2, window_bounds = array<i64: 64, 32>}, {pipeline_mode = #tpu.pipeline_mode<synchronous>, transform_indices = @transform_3, window_bounds = array<i64: 1, 32>}, {pipeline_mode = #tpu.pipeline_mode<synchronous>, transform_indices = @transform_4, window_bounds = array<i64: 1, 32>}, {pipeline_mode = #tpu.pipeline_mode<synchronous>, transform_indices = @transform_5, window_bounds = array<i64: 32, 32>}, {pipeline_mode = #tpu.pipeline_mode<synchronous>, transform_indices = @transform_6, window_bounds = array<i64: 1, 32>}, {pipeline_mode = #tpu.pipeline_mode<synchronous>, transform_indices = @transform_7, window_bounds = array<i64: 1, 32>}, {pipeline_mode = #tpu.pipeline_mode<synchronous>, transform_indices = @transform_8, window_bounds = array<i64: 32, 32>}, {transform_indices = @transform_9, window_bounds = array<i64: 1, 1>}]} {
    %c0 = arith.constant 0 : index
    %c0_0 = arith.constant 0 : index
    %0 = vector.load %arg1[%c0, %c0_0] : memref<128x64xbf16, #tpu.memory_space<vmem>>, vector<128x64xbf16>
    %c0_1 = arith.constant 0 : index
    %c0_2 = arith.constant 0 : index
    %1 = vector.load %arg2[%c0_1, %c0_2] : memref<64x64xbf16, #tpu.memory_space<vmem>>, vector<64x64xbf16>
    %cst = arith.constant dense<0.000000e+00> : vector<128x64xf32>
    %2 = tpu.matmul %0, %1, %cst {dimension_numbers = #tpu.dot_dimension_numbers<[1], [0], [0], [1], [0, 0, 1, 1], [], []>} : vector<128x64xbf16>, vector<64x64xbf16>, vector<128x64xf32> -> vector<128x64xf32>
    %cst_3 = arith.constant 0.000000e+00 : f32
    %3 = vector.broadcast %cst_3 : f32 to vector<128x64xf32>
    %4 = arith.maximumf %2, %3 : vector<128x64xf32>
    %5 = vector.shape_cast %4 : vector<128x64xf32> to vector<8x16x64xf32>
    %cst_4 = arith.constant dense<0.000000e+00> : vector<8x64xf32>
    %6 = vector.multi_reduction <add>, %5, %cst_4 [1] : vector<8x16x64xf32> to vector<8x64xf32>
    %cst_5 = arith.constant 1.600000e+01 : f32
    %7 = vector.broadcast %cst_5 : f32 to vector<8x64xf32>
    %8 = arith.divf %6, %7 : vector<8x64xf32>
    %c8_i32 = arith.constant 8 : i32
    %9 = arith.muli %arg0, %c8_i32 : i32
    %10 = tpu.assume_multiple %9, 8 : i32
    %11 = arith.index_cast %10 : i32 to index
    %c0_6 = arith.constant 0 : index
    %12 = vector.load %arg11[%11, %c0_6] : memref<16x64xf32, #tpu.memory_space<vmem>>, vector<8x64xf32>
    tpu.vector_store %arg11[%11, %c0_6], %8 {strides = array<i32>} : memref<16x64xf32, #tpu.memory_space<vmem>>, vector<8x64xf32>,
    %c1_i32 = arith.constant 1 : i32
    %13 = arith.cmpi eq, %arg0, %c1_i32 : i32
    %14 = arith.extui %13 : i1 to i32
    %c0_i32 = arith.constant 0 : i32
    %15 = arith.cmpi ne, %14, %c0_i32 : i32
    scf.if %15 {
      %c0_7 = arith.constant 0 : index
      %c0_8 = arith.constant 0 : index
      %16 = vector.load %arg11[%c0_7, %c0_8] : memref<16x64xf32, #tpu.memory_space<vmem>>, vector<16x64xf32>
      %c0_9 = arith.constant 0 : index
      %c0_10 = arith.constant 0 : index
      %17 = vector.load %arg3[%c0_9, %c0_10] : memref<64x32xf32, #tpu.memory_space<vmem>>, vector<64x32xf32>
      %cst_11 = arith.constant dense<0.000000e+00> : vector<16x32xf32>
      %18 = tpu.matmul %16, %17, %cst_11 {dimension_numbers = #tpu.dot_dimension_numbers<[1], [0], [0], [1], [0, 0, 1, 1], [], []>} : vector<16x64xf32>, vector<64x32xf32>, vector<16x32xf32> -> vector<16x32xf32>
      %c0_12 = arith.constant 0 : index
      %c0_13 = arith.constant 0 : index
      %19 = vector.load %arg4[%c0_12, %c0_13] : memref<1x32xf32, #tpu.memory_space<vmem>>, vector<1x32xf32>
      %c0_14 = arith.constant 0 : index
      %c0_15 = arith.constant 0 : index
      %20 = vector.load %arg5[%c0_14, %c0_15] : memref<1x32xf32, #tpu.memory_space<vmem>>, vector<1x32xf32>
      %21 = vector.shape_cast %18 : vector<16x32xf32> to vector<2x8x32xf32>
      %cst_16 = arith.constant dense<0.000000e+00> : vector<2x32xf32>
      %22 = vector.multi_reduction <add>, %21, %cst_16 [1] : vector<2x8x32xf32> to vector<2x32xf32>
      %23 = vector.shape_cast %22 : vector<2x32xf32> to vector<2x1x32xf32>
      %cst_17 = arith.constant 8.000000e+00 : f32
      %24 = vector.broadcast %cst_17 : f32 to vector<2x1x32xf32>
      %25 = arith.divf %23, %24 : vector<2x1x32xf32>
      %26 = arith.mulf %21, %21 : vector<2x8x32xf32>
      %cst_18 = arith.constant dense<0.000000e+00> : vector<2x32xf32>
      %27 = vector.multi_reduction <add>, %26, %cst_18 [1] : vector<2x8x32xf32> to vector<2x32xf32>
      %28 = vector.shape_cast %27 : vector<2x32xf32> to vector<2x1x32xf32>
      %cst_19 = arith.constant 8.000000e+00 : f32
      %29 = vector.broadcast %cst_19 : f32 to vector<2x1x32xf32>
      %30 = arith.divf %28, %29 : vector<2x1x32xf32>
      %31 = vector.broadcast %25 : vector<2x1x32xf32> to vector<2x8x32xf32>
      %32 = arith.subf %21, %31 : vector<2x8x32xf32>
      %33 = arith.mulf %25, %25 : vector<2x1x32xf32>
      %34 = arith.subf %30, %33 : vector<2x1x32xf32>
      %cst_20 = arith.constant 9.99999974E-6 : f32
      %35 = vector.broadcast %cst_20 : f32 to vector<2x1x32xf32>
      %36 = arith.addf %34, %35 : vector<2x1x32xf32>
      %37 = math.rsqrt %36 : vector<2x1x32xf32>
      %38 = vector.broadcast %37 : vector<2x1x32xf32> to vector<2x8x32xf32>
      %39 = arith.mulf %32, %38 : vector<2x8x32xf32>
      %40 = vector.shape_cast %39 : vector<2x8x32xf32> to vector<16x32xf32>
      %41 = vector.broadcast %19 : vector<1x32xf32> to vector<16x32xf32>
      %42 = arith.mulf %40, %41 : vector<16x32xf32>
      %43 = vector.broadcast %20 : vector<1x32xf32> to vector<16x32xf32>
      %44 = arith.addf %42, %43 : vector<16x32xf32>
      %cst_21 = arith.constant 0.000000e+00 : f32
      %45 = vector.broadcast %cst_21 : f32 to vector<16x32xf32>
      %46 = arith.maximumf %44, %45 : vector<16x32xf32>
      %c0_22 = arith.constant 0 : index
      %c0_23 = arith.constant 0 : index
      %47 = vector.load %arg6[%c0_22, %c0_23] : memref<32x32xf32, #tpu.memory_space<vmem>>, vector<32x32xf32>
      %cst_24 = arith.constant dense<0.000000e+00> : vector<16x32xf32>
      %48 = tpu.matmul %46, %47, %cst_24 {dimension_numbers = #tpu.dot_dimension_numbers<[1], [0], [0], [1], [0, 0, 1, 1], [], []>} : vector<16x32xf32>, vector<32x32xf32>, vector<16x32xf32> -> vector<16x32xf32>
      %c0_25 = arith.constant 0 : index
      %c0_26 = arith.constant 0 : index
      %49 = vector.load %arg7[%c0_25, %c0_26] : memref<1x32xf32, #tpu.memory_space<vmem>>, vector<1x32xf32>
      %c0_27 = arith.constant 0 : index
      %c0_28 = arith.constant 0 : index
      %50 = vector.load %arg8[%c0_27, %c0_28] : memref<1x32xf32, #tpu.memory_space<vmem>>, vector<1x32xf32>
      %51 = vector.shape_cast %48 : vector<16x32xf32> to vector<2x8x32xf32>
      %cst_29 = arith.constant dense<0.000000e+00> : vector<2x32xf32>
      %52 = vector.multi_reduction <add>, %51, %cst_29 [1] : vector<2x8x32xf32> to vector<2x32xf32>
      %53 = vector.shape_cast %52 : vector<2x32xf32> to vector<2x1x32xf32>
      %cst_30 = arith.constant 8.000000e+00 : f32
      %54 = vector.broadcast %cst_30 : f32 to vector<2x1x32xf32>
      %55 = arith.divf %53, %54 : vector<2x1x32xf32>
      %56 = arith.mulf %51, %51 : vector<2x8x32xf32>
      %cst_31 = arith.constant dense<0.000000e+00> : vector<2x32xf32>
      %57 = vector.multi_reduction <add>, %56, %cst_31 [1] : vector<2x8x32xf32> to vector<2x32xf32>
      %58 = vector.shape_cast %57 : vector<2x32xf32> to vector<2x1x32xf32>
      %cst_32 = arith.constant 8.000000e+00 : f32
      %59 = vector.broadcast %cst_32 : f32 to vector<2x1x32xf32>
      %60 = arith.divf %58, %59 : vector<2x1x32xf32>
      %61 = vector.broadcast %55 : vector<2x1x32xf32> to vector<2x8x32xf32>
      %62 = arith.subf %51, %61 : vector<2x8x32xf32>
      %63 = arith.mulf %55, %55 : vector<2x1x32xf32>
      %64 = arith.subf %60, %63 : vector<2x1x32xf32>
      %cst_33 = arith.constant 9.99999974E-6 : f32
      %65 = vector.broadcast %cst_33 : f32 to vector<2x1x32xf32>
      %66 = arith.addf %64, %65 : vector<2x1x32xf32>
      %67 = math.rsqrt %66 : vector<2x1x32xf32>
      %68 = vector.broadcast %67 : vector<2x1x32xf32> to vector<2x8x32xf32>
      %69 = arith.mulf %62, %68 : vector<2x8x32xf32>
      %70 = vector.shape_cast %69 : vector<2x8x32xf32> to vector<16x32xf32>
      %71 = vector.broadcast %49 : vector<1x32xf32> to vector<16x32xf32>
      %72 = arith.mulf %70, %71 : vector<16x32xf32>
      %73 = vector.broadcast %50 : vector<1x32xf32> to vector<16x32xf32>
      %74 = arith.addf %72, %73 : vector<16x32xf32>
      %cst_34 = arith.constant 0.000000e+00 : f32
      %75 = vector.broadcast %cst_34 : f32 to vector<16x32xf32>
      %76 = arith.maximumf %74, %75 : vector<16x32xf32>
      %c0_35 = arith.constant 0 : index
      %c0_36 = arith.constant 0 : index
      %77 = vector.load %arg9[%c0_35, %c0_36] : memref<32x32xf32, #tpu.memory_space<vmem>>, vector<32x32xf32>
      %cst_37 = arith.constant dense<0.000000e+00> : vector<16x32xf32>
      %78 = tpu.matmul %76, %77, %cst_37 {dimension_numbers = #tpu.dot_dimension_numbers<[1], [0], [0], [1], [0, 0, 1, 1], [], []>} : vector<16x32xf32>, vector<32x32xf32>, vector<16x32xf32> -> vector<16x32xf32>
      %79 = vector.shape_cast %78 : vector<16x32xf32> to vector<2x8x32xf32>
      %cst_38 = arith.constant dense<0.000000e+00> : vector<2x32xf32>
      %80 = vector.multi_reduction <add>, %79, %cst_38 [1] : vector<2x8x32xf32> to vector<2x32xf32>
      %81 = vector.shape_cast %80 : vector<2x32xf32> to vector<2x1x32xf32>
      %cst_39 = arith.constant 8.000000e+00 : f32
      %82 = vector.broadcast %cst_39 : f32 to vector<2x1x32xf32>
      %83 = arith.divf %81, %82 : vector<2x1x32xf32>
      %84 = arith.mulf %79, %79 : vector<2x8x32xf32>
      %cst_40 = arith.constant dense<0.000000e+00> : vector<2x32xf32>
      %85 = vector.multi_reduction <add>, %84, %cst_40 [1] : vector<2x8x32xf32> to vector<2x32xf32>
      %86 = vector.shape_cast %85 : vector<2x32xf32> to vector<2x1x32xf32>
      %cst_41 = arith.constant 8.000000e+00 : f32
      %87 = vector.broadcast %cst_41 : f32 to vector<2x1x32xf32>
      %88 = arith.divf %86, %87 : vector<2x1x32xf32>
      %89 = vector.broadcast %83 : vector<2x1x32xf32> to vector<2x8x32xf32>
      %90 = arith.subf %79, %89 : vector<2x8x32xf32>
      %91 = arith.mulf %83, %83 : vector<2x1x32xf32>
      %92 = arith.subf %88, %91 : vector<2x1x32xf32>
      %cst_42 = arith.constant 9.99999974E-6 : f32
      %93 = vector.broadcast %cst_42 : f32 to vector<2x1x32xf32>
      %94 = arith.addf %92, %93 : vector<2x1x32xf32>
      %95 = math.rsqrt %94 : vector<2x1x32xf32>
      %96 = vector.broadcast %95 : vector<2x1x32xf32> to vector<2x8x32xf32>
      %97 = arith.mulf %90, %96 : vector<2x8x32xf32>
      %98 = vector.shape_cast %97 : vector<2x8x32xf32> to vector<16x32xf32>
      %99 = vector.extract_strided_slice %98 {offsets = [0, 0], sizes = [8, 32], strides = [1, 1]} : vector<16x32xf32> to vector<8x32xf32>
      %100 = vector.extract_strided_slice %98 {offsets = [8, 0], sizes = [8, 32], strides = [1, 1]} : vector<16x32xf32> to vector<8x32xf32>
      %cst_43 = arith.constant dense<0.000000e+00> : vector<32x32xf32>
      %101 = tpu.matmul %99, %100, %cst_43 {dimension_numbers = #tpu.dot_dimension_numbers<[0], [0], [1], [1], [0, 1, 1, 1], [], []>} : vector<8x32xf32>, vector<8x32xf32>, vector<32x32xf32> -> vector<32x32xf32>
      %cst_44 = arith.constant 8.000000e+00 : f32
      %102 = vector.broadcast %cst_44 : f32 to vector<32x32xf32>
      %103 = arith.divf %101, %102 : vector<32x32xf32>
      %104 = tpu.iota {dimensions = array<i32: 0>} : vector<32x32xi32>
      %105 = tpu.iota {dimensions = array<i32: 1>} : vector<32x32xi32>
      %106 = arith.cmpi eq, %104, %105 : vector<32x32xi32>
      %107 = arith.mulf %103, %103 : vector<32x32xf32>
      %108 = vector.shape_cast %107 : vector<32x32xf32> to vector<1x32x32xf32>
      %cst_45 = arith.constant dense<0.000000e+00> : vector<1xf32>
      %109 = vector.multi_reduction <add>, %108, %cst_45 [1, 2] : vector<1x32x32xf32> to vector<1xf32>
      %110 = vector.shape_cast %109 : vector<1xf32> to vector<1x1x1xf32>
      %111 = vector.extract %110[0, 0, 0] : f32 from vector<1x1x1xf32>
      %cst_46 = arith.constant 0.000000e+00 : f32
      %112 = vector.broadcast %cst_46 : f32 to vector<32x32xf32>
      %113 = arith.select %106, %107, %112 : vector<32x32xi1>, vector<32x32xf32>
      %114 = vector.shape_cast %113 : vector<32x32xf32> to vector<1x32x32xf32>
      %cst_47 = arith.constant dense<0.000000e+00> : vector<1xf32>
      %115 = vector.multi_reduction <add>, %114, %cst_47 [1, 2] : vector<1x32x32xf32> to vector<1xf32>
      %116 = vector.shape_cast %115 : vector<1xf32> to vector<1x1x1xf32>
      %117 = vector.extract %116[0, 0, 0] : f32 from vector<1x1x1xf32>
      %cst_48 = arith.constant 0.000000e+00 : f32
      %118 = vector.broadcast %cst_48 : f32 to vector<32x32xf32>
      %119 = arith.select %106, %103, %118 : vector<32x32xi1>, vector<32x32xf32>
      %120 = vector.shape_cast %119 : vector<32x32xf32> to vector<1x32x32xf32>
      %cst_49 = arith.constant dense<0.000000e+00> : vector<1xf32>
      %121 = vector.multi_reduction <add>, %120, %cst_49 [1, 2] : vector<1x32x32xf32> to vector<1xf32>
      %122 = vector.shape_cast %121 : vector<1xf32> to vector<1x1x1xf32>
      %123 = vector.extract %122[0, 0, 0] : f32 from vector<1x1x1xf32>
      %cst_50 = arith.constant 2.000000e+00 : f32
      %124 = arith.mulf %cst_50, %123 : f32
      %125 = arith.subf %117, %124 : f32
      %cst_51 = arith.constant 3.200000e+01 : f32
      %126 = arith.addf %125, %cst_51 : f32
      %127 = arith.subf %111, %117 : f32
      %cst_52 = arith.constant 5.100000e-03 : f32
      %128 = arith.mulf %cst_52, %127 : f32
      %129 = arith.addf %126, %128 : f32
      %c0_53 = arith.constant 0 : index
      %c0_54 = arith.constant 0 : index
      %130 = memref.load %arg10[%c0_53, %c0_54] : memref<1x1xf32, #tpu.memory_space<smem>>
      memref.store %129, %arg10[%c0_53, %c0_54] : memref<1x1xf32, #tpu.memory_space<smem>>
    } else {
    }
    return
  }
  func.func @transform_0(%arg0: i32) -> (i32, i32) {
    %c0_i32 = arith.constant 0 : i32
    %c0_i32_0 = arith.constant 0 : i32
    return %arg0, %c0_i32 : i32, i32
  }
  func.func @transform_1(%arg0: i32) -> (i32, i32) {
    %c0_i32 = arith.constant 0 : i32
    %c0_i32_0 = arith.constant 0 : i32
    %c0_i32_1 = arith.constant 0 : i32
    return %c0_i32, %c0_i32_0 : i32, i32
  }
  func.func @transform_2(%arg0: i32) -> (i32, i32) {
    %c0_i32 = arith.constant 0 : i32
    %c0_i32_0 = arith.constant 0 : i32
    %c0_i32_1 = arith.constant 0 : i32
    return %c0_i32, %c0_i32_0 : i32, i32
  }
  func.func @transform_3(%arg0: i32) -> (i32, i32) {
    %c0_i32 = arith.constant 0 : i32
    %c0_i32_0 = arith.constant 0 : i32
    %c0_i32_1 = arith.constant 0 : i32
    return %c0_i32, %c0_i32_0 : i32, i32
  }
  func.func @transform_4(%arg0: i32) -> (i32, i32) {
    %c0_i32 = arith.constant 0 : i32
    %c0_i32_0 = arith.constant 0 : i32
    %c0_i32_1 = arith.constant 0 : i32
    return %c0_i32, %c0_i32_0 : i32, i32
  }
  func.func @transform_5(%arg0: i32) -> (i32, i32) {
    %c0_i32 = arith.constant 0 : i32
    %c0_i32_0 = arith.constant 0 : i32
    %c0_i32_1 = arith.constant 0 : i32
    return %c0_i32, %c0_i32_0 : i32, i32
  }
  func.func @transform_6(%arg0: i32) -> (i32, i32) {
    %c0_i32 = arith.constant 0 : i32
    %c0_i32_0 = arith.constant 0 : i32
    %c0_i32_1 = arith.constant 0 : i32
    return %c0_i32, %c0_i32_0 : i32, i32
  }
  func.func @transform_7(%arg0: i32) -> (i32, i32) {
    %c0_i32 = arith.constant 0 : i32
    %c0_i32_0 = arith.constant 0 : i32
    %c0_i32_1 = arith.constant 0 : i32
    return %c0_i32, %c0_i32_0 : i32, i32
  }
  func.func @transform_8(%arg0: i32) -> (i32, i32) {
    %c0_i32 = arith.constant 0 : i32
    %c0_i32_0 = arith.constant 0 : i32
    %c0_i32_1 = arith.constant 0 : i32
    return %c0_i32, %c0_i32_0 : i32, i32
  }
  func.func @transform_9(%arg0: i32) -> (i32, i32) {
    %c0_i32 = arith.constant 0 : i32
    %c0_i32_0 = arith.constant 0 : i32
    %c0_i32_1 = arith.constant 0 : i32
    return %c0_i32, %c0_i32_0 : i32, i32
  }
}

</mosaic_0001>

<llo_original>
// kernel: dsbn_barlow_twins.1
$region0: #{dsbn_barlow_twins.1}
  #allocation0 [shape = 'u32[]', space=smem, size = 0x4, offset = 0x4, fixed_abs, tag = 'smem constant byte address 0x4 - core index']
  #allocation1 [shape = 'u32[72,128]{1,0:T(1,128)}', space=vmem, size = 0x9000, scoped, tag = 'internal scratch']
  #allocation2 [shape = 'f32[16,64]{1,0:T(8,128)}', space=vmem, size = 0x2000, scoped, tag = 'scratch operand']
  %s0 = inlined_call_operand.vmem [shape: bf16[256,64], index: 0, kind: input, shape index: {}]
  %s1 = inlined_call_operand.vmem [shape: bf16[64,64], index: 1, kind: input, shape index: {}]
  %s2 = inlined_call_operand.vmem [shape: f32[64,32], index: 2, kind: input, shape index: {}]
  %s3 = inlined_call_operand.vmem [shape: f32[1,32], index: 3, kind: input, shape index: {}]
  %s4 = inlined_call_operand.vmem [shape: f32[1,32], index: 4, kind: input, shape index: {}]
  %s5 = inlined_call_operand.vmem [shape: f32[32,32], index: 5, kind: input, shape index: {}]
  %s6 = inlined_call_operand.vmem [shape: f32[1,32], index: 6, kind: input, shape index: {}]
  %s7 = inlined_call_operand.vmem [shape: f32[1,32], index: 7, kind: input, shape index: {}]
  %s8 = inlined_call_operand.vmem [shape: f32[32,32], index: 8, kind: input, shape index: {}]
  %s9 = inlined_call_operand.hbm [shape: f32[1,1], index: 9, kind: output, shape index: {}]
  %s10 = sld [smem:[#allocation0]]
  $region73: #{dsbn_barlow_twins.1} parent=0
    _
  %s12 = ssub.s32 1, %s10
  %s13 = scalar_select 0, %s12, %s10
  $region1: #{dsbn_barlow_twins.1} parent=0
    #allocation3 [shape = 'u8[512]{0}', space=smem, size = 0x200, scoped, tag = 'output window, operand 0, single buffered']
    #allocation4 [shape = 's32[2]{0}', space=sflag, size = 0x8, scoped, tag = 'scoped memory for dsbn_barlow_twins.1']
    %14 = vsyncpa [#allocation4], 0
    loop: start=0, step=1, limit=4
    $region2: #{dsbn_barlow_twins.1} parent=1 // loop_pre_header
      _
    $region3: #{dsbn_barlow_twins.1} parent=1 // loop_header
      %s16 = sphi 0, %s20
      %p17 = scmp.ge.s32.totalorder %s16, 4
      %s26 = sphi 0, %s28
      %s29 = sphi 0, %s26
      %s30 = sphi 0, %s29
      %s46 = sphi 0, %s30
      %s50 = sphi 0, %s50
      %s52 = sphi 0, %s50
      %s53 = sphi 0, %s52
      %s67 = sphi 0, %s53
      %s71 = sphi 0, %s71
      %s73 = sphi 0, %s71
      %s74 = sphi 0, %s73
      %s88 = sphi 0, %s74
      %s92 = sphi 0, %s92
      %s94 = sphi 0, %s92
      %s95 = sphi 0, %s94
      %s109 = sphi 0, %s95
      %s113 = sphi 0, %s113
      %s115 = sphi 0, %s113
      %s116 = sphi 0, %s115
      %s130 = sphi 0, %s116
      %s134 = sphi 0, %s134
      %s136 = sphi 0, %s134
      %s137 = sphi 0, %s136
      %s151 = sphi 0, %s137
      %s155 = sphi 0, %s155
      %s157 = sphi 0, %s155
      %s158 = sphi 0, %s157
      %s172 = sphi 0, %s158
      %s176 = sphi 0, %s176
      %s178 = sphi 0, %s176
      %s179 = sphi 0, %s178
      %s193 = sphi 0, %s179
      %s197 = sphi 0, %s197
      %s199 = sphi 0, %s197
      %s200 = sphi 0, %s199
      %s214 = sphi 0, %s200
      %s218 = sphi 0, %s218
      %s220 = sphi 0, %s218
      %s221 = sphi 0, %s220
      %s235 = sphi 0, %s221
    $region4: #{dsbn_barlow_twins.1} parent=1 // loop_header_branch
      %19 = sbr.rel (%p17) target = $region8
    $region5: #{dsbn_barlow_twins.1} parent=1 // loop_body
      %s21 = ssub.s32 %s16, 1
      %s22 = ssub.s32 %s16, 2
      %s23 = sadd.s32 %s16, 1
      %s24 = ssub.s32 %s16, %s23
      %p25 = scmp.eq.s32.totalorder %s24, 0
      %s27 = sadd.s32 %s26, 1
      %s28 = scalar_select %p25, %s26, %s27
      %p31 = pneg %p25
      %p32 = scmp.eq.s32.totalorder %s16, 1
      %p33 = por %p31, %p32
      %p34 = scmp.ne.s32.totalorder %s26, %s29
      %p35 = scmp.eq.s32.totalorder %s16, 0
      %p36 = por %p34, %p35
      %p37 = scmp.ne.s32.totalorder %s26, %s29
      %p38 = scmp.eq.s32.totalorder %s21, 1
      %p39 = por %p37, %p38
      %p40 = scmp.ne.s32.totalorder %s29, %s30
      %p41 = scmp.eq.s32.totalorder %s21, 0
      %p42 = por %p40, %p41
      %p43 = scmp.ne.s32.totalorder %s29, %s30
      %p44 = scmp.eq.s32.totalorder %s22, 1
      %p45 = por %p43, %p44
      %p47 = scmp.ne.s32.totalorder %s30, %s46
      %p48 = scmp.eq.s32.totalorder %s22, 0
      %p49 = por %p47, %p48
      %s51 = sadd.s32 %s50, 1
      %p54 = scmp.eq.s32.totalorder %s16, 1
      %p55 = scmp.ne.s32.totalorder %s50, %s52
      %p56 = scmp.eq.s32.totalorder %s16, 0
      %p57 = por %p55, %p56
      %p58 = scmp.ne.s32.totalorder %s50, %s52
      %p59 = scmp.eq.s32.totalorder %s21, 1
      %p60 = por %p58, %p59
      %p61 = scmp.ne.s32.totalorder %s52, %s53
      %p62 = scmp.eq.s32.totalorder %s21, 0
      %p63 = por %p61, %p62
      %p64 = scmp.ne.s32.totalorder %s52, %s53
      %p65 = scmp.eq.s32.totalorder %s22, 1
      %p66 = por %p64, %p65
      %p68 = scmp.ne.s32.totalorder %s53, %s67
      %p69 = scmp.eq.s32.totalorder %s22, 0
      %p70 = por %p68, %p69
      %s72 = sadd.s32 %s71, 1
      %p75 = scmp.eq.s32.totalorder %s16, 1
      %p76 = scmp.ne.s32.totalorder %s71, %s73
      %p77 = scmp.eq.s32.totalorder %s16, 0
      %p78 = por %p76, %p77
      %p79 = scmp.ne.s32.totalorder %s71, %s73
      %p80 = scmp.eq.s32.totalorder %s21, 1
      %p81 = por %p79, %p80
      %p82 = scmp.ne.s32.totalorder %s73, %s74
      %p83 = scmp.eq.s32.totalorder %s21, 0
      %p84 = por %p82, %p83
      %p85 = scmp.ne.s32.totalorder %s73, %s74
      %p86 = scmp.eq.s32.totalorder %s22, 1
      %p87 = por %p85, %p86
      %p89 = scmp.ne.s32.totalorder %s74, %s88
      %p90 = scmp.eq.s32.totalorder %s22, 0
      %p91 = por %p89, %p90
      %s93 = sadd.s32 %s92, 1
      %p96 = scmp.eq.s32.totalorder %s16, 1
      %p97 = scmp.ne.s32.totalorder %s92, %s94
      %p98 = scmp.eq.s32.totalorder %s16, 0
      %p99 = por %p97, %p98
      %p100 = scmp.ne.s32.totalorder %s92, %s94
      %p101 = scmp.eq.s32.totalorder %s21, 1
      %p102 = por %p100, %p101
      %p103 = scmp.ne.s32.totalorder %s94, %s95
      %p104 = scmp.eq.s32.totalorder %s21, 0
      %p105 = por %p103, %p104
      %p106 = scmp.ne.s32.totalorder %s94, %s95
      %p107 = scmp.eq.s32.totalorder %s22, 1
      %p108 = por %p106, %p107
      %p110 = scmp.ne.s32.totalorder %s95, %s109
      %p111 = scmp.eq.s32.totalorder %s22, 0
      %p112 = por %p110, %p111
      %s114 = sadd.s32 %s113, 1
      %p117 = scmp.eq.s32.totalorder %s16, 1
      %p118 = scmp.ne.s32.totalorder %s113, %s115
      %p119 = scmp.eq.s32.totalorder %s16, 0
      %p120 = por %p118, %p119
      %p121 = scmp.ne.s32.totalorder %s113, %s115
      %p122 = scmp.eq.s32.totalorder %s21, 1
      %p123 = por %p121, %p122
      %p124 = scmp.ne.s32.totalorder %s115, %s116
      %p125 = scmp.eq.s32.totalorder %s21, 0
      %p126 = por %p124, %p125
      %p127 = scmp.ne.s32.totalorder %s115, %s116
      %p128 = scmp.eq.s32.totalorder %s22, 1
      %p129 = por %p127, %p128
      %p131 = scmp.ne.s32.totalorder %s116, %s130
      %p132 = scmp.eq.s32.totalorder %s22, 0
      %p133 = por %p131, %p132
      %s135 = sadd.s32 %s134, 1
      %p138 = scmp.eq.s32.totalorder %s16, 1
      %p139 = scmp.ne.s32.totalorder %s134, %s136
      %p140 = scmp.eq.s32.totalorder %s16, 0
      %p141 = por %p139, %p140
      %p142 = scmp.ne.s32.totalorder %s134, %s136
      %p143 = scmp.eq.s32.totalorder %s21, 1
      %p144 = por %p142, %p143
      %p145 = scmp.ne.s32.totalorder %s136, %s137
      %p146 = scmp.eq.s32.totalorder %s21, 0
      %p147 = por %p145, %p146
      %p148 = scmp.ne.s32.totalorder %s136, %s137
      %p149 = scmp.eq.s32.totalorder %s22, 1
      %p150 = por %p148, %p149
      %p152 = scmp.ne.s32.totalorder %s137, %s151
      %p153 = scmp.eq.s32.totalorder %s22, 0
      %p154 = por %p152, %p153
      %s156 = sadd.s32 %s155, 1
      %p159 = scmp.eq.s32.totalorder %s16, 1
      %p160 = scmp.ne.s32.totalorder %s155, %s157
      %p161 = scmp.eq.s32.totalorder %s16, 0
      %p162 = por %p160, %p161
      %p163 = scmp.ne.s32.totalorder %s155, %s157
      %p164 = scmp.eq.s32.totalorder %s21, 1
      %p165 = por %p163, %p164
      %p166 = scmp.ne.s32.totalorder %s157, %s158
      %p167 = scmp.eq.s32.totalorder %s21, 0
      %p168 = por %p166, %p167
      %p169 = scmp.ne.s32.totalorder %s157, %s158
      %p170 = scmp.eq.s32.totalorder %s22, 1
      %p171 = por %p169, %p170
      %p173 = scmp.ne.s32.totalorder %s158, %s172
      %p174 = scmp.eq.s32.totalorder %s22, 0
      %p175 = por %p173, %p174
      %s177 = sadd.s32 %s176, 1
      %p180 = scmp.eq.s32.totalorder %s16, 1
      %p181 = scmp.ne.s32.totalorder %s176, %s178
      %p182 = scmp.eq.s32.totalorder %s16, 0
      %p183 = por %p181, %p182
      %p184 = scmp.ne.s32.totalorder %s176, %s178
      %p185 = scmp.eq.s32.totalorder %s21, 1
      %p186 = por %p184, %p185
      %p187 = scmp.ne.s32.totalorder %s178, %s179
      %p188 = scmp.eq.s32.totalorder %s21, 0
      %p189 = por %p187, %p188
      %p190 = scmp.ne.s32.totalorder %s178, %s179
      %p191 = scmp.eq.s32.totalorder %s22, 1
      %p192 = por %p190, %p191
      %p194 = scmp.ne.s32.totalorder %s179, %s193
      %p195 = scmp.eq.s32.totalorder %s22, 0
      %p196 = por %p194, %p195
      %s198 = sadd.s32 %s197, 1
      %p201 = scmp.eq.s32.totalorder %s16, 1
      %p202 = scmp.ne.s32.totalorder %s197, %s199
      %p203 = scmp.eq.s32.totalorder %s16, 0
      %p204 = por %p202, %p203
      %p205 = scmp.ne.s32.totalorder %s197, %s199
      %p206 = scmp.eq.s32.totalorder %s21, 1
      %p207 = por %p205, %p206
      %p208 = scmp.ne.s32.totalorder %s199, %s200
      %p209 = scmp.eq.s32.totalorder %s21, 0
      %p210 = por %p208, %p209
      %p211 = scmp.ne.s32.totalorder %s199, %s200
      %p212 = scmp.eq.s32.totalorder %s22, 1
      %p213 = por %p211, %p212
      %p215 = scmp.ne.s32.totalorder %s200, %s214
      %p216 = scmp.eq.s32.totalorder %s22, 0
      %p217 = por %p215, %p216
      %s219 = sadd.s32 %s218, 1
      %p222 = scmp.eq.s32.totalorder %s16, 1
      %p223 = scmp.ne.s32.totalorder %s218, %s220
      %p224 = scmp.eq.s32.totalorder %s16, 0
      %p225 = por %p223, %p224
      %p226 = scmp.ne.s32.totalorder %s218, %s220
      %p227 = scmp.eq.s32.totalorder %s21, 1
      %p228 = por %p226, %p227
      %p229 = scmp.ne.s32.totalorder %s220, %s221
      %p230 = scmp.eq.s32.totalorder %s21, 0
      %p231 = por %p229, %p230
      %p232 = scmp.ne.s32.totalorder %s220, %s221
      %p233 = scmp.eq.s32.totalorder %s22, 1
      %p234 = por %p232, %p233
      %p236 = scmp.ne.s32.totalorder %s221, %s235
      %p237 = scmp.eq.s32.totalorder %s22, 0
      %p238 = por %p236, %p237
      %p239 = scmp.le.s32.totalorder 1, %s16
      %p240 = scmp.lt.s32.totalorder %s16, 3
      %p241 = pnand %p239, %p240
      %p242 = pneg %p241
      // Predicated region
      $region9: #{dsbn_barlow_twins.1} parent=5 // pred_check
        _
      $region10: #{dsbn_barlow_twins.1} parent=5 // pred_check_branch
        %244 = sbr.rel (%p241) target = $region12
      $region11: #{dsbn_barlow_twins.1} parent=5 // pred_region
        %s245 = ssub.s32 %s16, 1
        // Predicated region
        $region13: #{dsbn_barlow_twins.1} parent=11 // pred_check
          %p246 = pneg %p63
        $region14: #{dsbn_barlow_twins.1} parent=11 // pred_check_branch
          %248 = sbr.rel (%p246) target = $region16
        $region15: #{dsbn_barlow_twins.1} parent=11 // pred_region
          _
        $region16: #{dsbn_barlow_twins.1} parent=11 // pred_fallthru
          _
        // Predicated region
        $region17: #{dsbn_barlow_twins.1} parent=11 // pred_check
          %p249 = pneg %p84
        $region18: #{dsbn_barlow_twins.1} parent=11 // pred_check_branch
          %251 = sbr.rel (%p249) target = $region20
        $region19: #{dsbn_barlow_twins.1} parent=11 // pred_region
          _
        $region20: #{dsbn_barlow_twins.1} parent=11 // pred_fallthru
          _
        // Predicated region
        $region21: #{dsbn_barlow_twins.1} parent=11 // pred_check
          %p252 = pneg %p105
        $region22: #{dsbn_barlow_twins.1} parent=11 // pred_check_branch
          %254 = sbr.rel (%p252) target = $region24
        $region23: #{dsbn_barlow_twins.1} parent=11 // pred_region
          _
        $region24: #{dsbn_barlow_twins.1} parent=11 // pred_fallthru
          _
        // Predicated region
        $region25: #{dsbn_barlow_twins.1} parent=11 // pred_check
          %p255 = pneg %p126
        $region26: #{dsbn_barlow_twins.1} parent=11 // pred_check_branch
          %257 = sbr.rel (%p255) target = $region28
        $region27: #{dsbn_barlow_twins.1} parent=11 // pred_region
          _
        $region28: #{dsbn_barlow_twins.1} parent=11 // pred_fallthru
          _
        // Predicated region
        $region29: #{dsbn_barlow_twins.1} parent=11 // pred_check
          %p258 = pneg %p147
        $region30: #{dsbn_barlow_twins.1} parent=11 // pred_check_branch
          %260 = sbr.rel (%p258) target = $region32
        $region31: #{dsbn_barlow_twins.1} parent=11 // pred_region
          _
        $region32: #{dsbn_barlow_twins.1} parent=11 // pred_fallthru
          _
        // Predicated region
        $region33: #{dsbn_barlow_twins.1} parent=11 // pred_check
          %p261 = pneg %p168
        $region34: #{dsbn_barlow_twins.1} parent=11 // pred_check_branch
          %263 = sbr.rel (%p261) target = $region36
        $region35: #{dsbn_barlow_twins.1} parent=11 // pred_region
          _
        $region36: #{dsbn_barlow_twins.1} parent=11 // pred_fallthru
          _
        // Predicated region
        $region37: #{dsbn_barlow_twins.1} parent=11 // pred_check
          %p264 = pneg %p189
        $region38: #{dsbn_barlow_twins.1} parent=11 // pred_check_branch
          %266 = sbr.rel (%p264) target = $region40
        $region39: #{dsbn_barlow_twins.1} parent=11 // pred_region
          _
        $region40: #{dsbn_barlow_twins.1} parent=11 // pred_fallthru
          _
        // Predicated region
        $region41: #{dsbn_barlow_twins.1} parent=11 // pred_check
          %p267 = pneg %p210
        $region42: #{dsbn_barlow_twins.1} parent=11 // pred_check_branch
          %269 = sbr.rel (%p267) target = $region44
        $region43: #{dsbn_barlow_twins.1} parent=11 // pred_region
          _
        $region44: #{dsbn_barlow_twins.1} parent=11 // pred_fallthru
          _
      $region12: #{dsbn_barlow_twins.1} parent=5 // pred_fallthru
        _
      %p270 = scmp.lt.s32.totalorder %s16, 2
      // Predicated region
      $region45: #{dsbn_barlow_twins.1} parent=5 // pred_check
        %p271 = pneg %p270
      $region46: #{dsbn_barlow_twins.1} parent=5 // pred_check_branch
        %273 = sbr.rel (%p271) target = $region48
      $region47: #{dsbn_barlow_twins.1} parent=5 // pred_region
        // Predicated region
        $region49: #{dsbn_barlow_twins.1} parent=47 // pred_check
          %p274 = pneg %p36
        $region50: #{dsbn_barlow_twins.1} parent=47 // pred_check_branch
          %276 = sbr.rel (%p274) target = $region52
        $region51: #{dsbn_barlow_twins.1} parent=47 // pred_region
          %s277 = smul.u32 16, %s16
          %p278 = scmp.lt.s32.totalorder %s277, 31
          %s279 = scalar_select %p278, %s277, 31
          %s280 = smul.addr %s279, 4
          %s281 = scalar_lea.vmem %s0, %s280
          %s282 = smul.u32 16, %s16
        $region52: #{dsbn_barlow_twins.1} parent=47 // pred_fallthru
          _
      $region48: #{dsbn_barlow_twins.1} parent=5 // pred_fallthru
        _
      %p283 = scmp.le.s32.totalorder 1, %s16
      %p284 = scmp.lt.s32.totalorder %s16, 3
      %p285 = pnand %p283, %p284
      %p286 = pneg %p285
      // Predicated region
      $region53: #{dsbn_barlow_twins.1} parent=5 // pred_check
        _
      $region54: #{dsbn_barlow_twins.1} parent=5 // pred_check_branch
        %288 = sbr.rel (%p285) target = $region56
      $region55: #{dsbn_barlow_twins.1} parent=5 // pred_region
        %s289 = ssub.s32 %s16, 1
        %s290 = smul.u32 16, %s21
        %p291 = scmp.lt.s32.totalorder %s290, 31
        %s292 = scalar_select %p291, %s290, 31
        %s293 = smul.addr %s292, 4
        %s294 = scalar_lea.vmem %s0, %s293
        %p295 = pneg %p42
        %p296 = pneg %p39
        %p297 = pneg %p63
        %p298 = pneg %p60
        %p299 = pneg %p84
        %p300 = pneg %p81
        %p301 = pneg %p105
        %p302 = pneg %p102
        %p303 = pneg %p126
        %p304 = pneg %p123
        %p305 = pneg %p147
        %p306 = pneg %p144
        %p307 = pneg %p168
        %p308 = pneg %p165
        %p309 = pneg %p189
        %p310 = pneg %p186
        %p311 = pneg %p210
        %p312 = pneg %p207
        %p313 = pneg %p231
        %p314 = pneg %p228
        %s315 = smul.u32 16, %s21
        %p316 = scmp.lt.s32.totalorder %s315, 31
        %s317 = scalar_select %p316, %s315, 31
        %s318 = smul.addr %s317, 4
        %s319 = scalar_lea.vmem %s0, %s318
        %s320 = smul.u32 16, %s21
        %v322 = vld [vmem:[%s319] sm:$0xf]
        %v323 = vld [vmem:[%s319 + $0x4] sm:$0xf]
        %v324 = vld [vmem:[%s319 + $0x8] sm:$0xf]
        %v325 = vld [vmem:[%s319 + $0xc] sm:$0xf]
        %v326 = vld [vmem:[%s319 + $0x10] sm:$0xf]
        %v327 = vld [vmem:[%s319 + $0x14] sm:$0xf]
        %v328 = vld [vmem:[%s319 + $0x18] sm:$0xf]
        %v329 = vld [vmem:[%s319 + $0x1c] sm:$0xf]
        %v330 = vld [vmem:[%s319 + $0x20] sm:$0xf]
        %v331 = vld [vmem:[%s319 + $0x24] sm:$0xf]
        %v332 = vld [vmem:[%s319 + $0x28] sm:$0xf]
        %v333 = vld [vmem:[%s319 + $0x2c] sm:$0xf]
        %v334 = vld [vmem:[%s319 + $0x30] sm:$0xf]
        %v335 = vld [vmem:[%s319 + $0x34] sm:$0xf]
        %v336 = vld [vmem:[%s319 + $0x38] sm:$0xf]
        %v337 = vld [vmem:[%s319 + $0x3c] sm:$0xf]
        %v338 = vld [vmem:[%s1] sm:$0xf]
        %v339 = vld [vmem:[%s1 + $0x4] sm:$0xf]
        %v340 = vld [vmem:[%s1 + $0x8] sm:$0xf]
        %v341 = vld [vmem:[%s1 + $0xc] sm:$0xf]
        %v342 = vld [vmem:[%s1 + $0x10] sm:$0xf]
        %v343 = vld [vmem:[%s1 + $0x14] sm:$0xf]
        %v344 = vld [vmem:[%s1 + $0x18] sm:$0xf]
        %v345 = vld [vmem:[%s1 + $0x1c] sm:$0xf]
        %v362 = vunpack.c.l.b16 %v322
        %v363 = vunpack.c.l.b16 %v323
        %v364 = vunpack.c.l.b16 %v324
        %v365 = vunpack.c.l.b16 %v325
        %v366 = vunpack.c.l.b16 %v326
        %v367 = vunpack.c.l.b16 %v327
        %v368 = vunpack.c.l.b16 %v328
        %v369 = vunpack.c.l.b16 %v329
        %v370 = vunpack.c.l.b16 %v330
        %v371 = vunpack.c.l.b16 %v331
        %v372 = vunpack.c.l.b16 %v332
        %v373 = vunpack.c.l.b16 %v333
        %v374 = vunpack.c.l.b16 %v334
        %v375 = vunpack.c.l.b16 %v335
        %v376 = vunpack.c.l.b16 %v336
        %v377 = vunpack.c.l.b16 %v337
        %v378 = vpack.c.b16 %v363, %v362
        %v379 = vpack.c.b16 %v365, %v364
        %v380 = vpack.c.b16 %v367, %v366
        %v381 = vpack.c.b16 %v369, %v368
        %v382 = vpack.c.b16 %v371, %v370
        %v383 = vpack.c.b16 %v373, %v372
        %v384 = vpack.c.b16 %v375, %v374
        %v385 = vpack.c.b16 %v377, %v376
        %v394 = vunpack.c.l.b16 %v338
        %v395 = vunpack.c.l.b16 %v339
        %v396 = vunpack.c.l.b16 %v340
        %v397 = vunpack.c.l.b16 %v341
        %v398 = vunpack.c.l.b16 %v342
        %v399 = vunpack.c.l.b16 %v343
        %v400 = vunpack.c.l.b16 %v344
        %v401 = vunpack.c.l.b16 %v345
        %v402 = vpack.c.b16 %v395, %v394
        %v403 = vpack.c.b16 %v397, %v396
        %v404 = vpack.c.b16 %v399, %v398
        %v405 = vpack.c.b16 %v401, %v400
        %vm410 = vcmask 523264
        %v412 = vsel %vm410, %v378, 0
        %v415 = vsel %vm410, %v379, 0
        %v418 = vsel %vm410, %v380, 0
        %v421 = vsel %vm410, %v381, 0
        %v424 = vsel %vm410, %v382, 0
        %v427 = vsel %vm410, %v383, 0
        %v430 = vsel %vm410, %v384, 0
        %v433 = vsel %vm410, %v385, 0
        %435 = vmatpush.bf16.msra.mxu0 0
        %436 = vmatpush.bf16.msra.mxu0 0
        %437 = vmatpush.bf16.msra.mxu0 0
        %438 = vmatpush.bf16.msra.mxu0 0
        %439 = vmatpush.bf16.msra.mxu0 %v405
        %440 = vmatpush.bf16.msra.mxu0 %v404
        %441 = vmatpush.bf16.msra.mxu0 %v403
        %442 = vmatpush.bf16.msra.mxu0 %v402
        %443 = vmatmul.bf16.gmra.mxu0 %v412
        %v444 = vpop.f32.mrf.mxu0
        %v445 = vadd.f32 0.0, %v444
        %v446 = vpop.f32.mrf.mxu0
        %v447 = vadd.f32 0.0, %v446
        %448 = vmatmul.bf16.gmra.mxu0 %v415
        %v449 = vpop.f32.mrf.mxu0
        %v450 = vadd.f32 0.0, %v449
        %v451 = vpop.f32.mrf.mxu0
        %v452 = vadd.f32 0.0, %v451
        %453 = vmatmul.bf16.gmra.mxu0 %v418
        %v454 = vpop.f32.mrf.mxu0
        %v455 = vadd.f32 0.0, %v454
        %v456 = vpop.f32.mrf.mxu0
        %v457 = vadd.f32 0.0, %v456
        %458 = vmatmul.bf16.gmra.mxu0 %v421
        %v459 = vpop.f32.mrf.mxu0
        %v460 = vadd.f32 0.0, %v459
        %v461 = vpop.f32.mrf.mxu0
        %v462 = vadd.f32 0.0, %v461
        %463 = vmatmul.bf16.gmra.mxu0 %v424
        %v464 = vpop.f32.mrf.mxu0
        %v465 = vadd.f32 0.0, %v464
        %v466 = vpop.f32.mrf.mxu0
        %v467 = vadd.f32 0.0, %v466
        %468 = vmatmul.bf16.gmra.mxu0 %v427
        %v469 = vpop.f32.mrf.mxu0
        %v470 = vadd.f32 0.0, %v469
        %v471 = vpop.f32.mrf.mxu0
        %v472 = vadd.f32 0.0, %v471
        %473 = vmatmul.bf16.gmra.mxu0 %v430
        %v474 = vpop.f32.mrf.mxu0
        %v475 = vadd.f32 0.0, %v474
        %v476 = vpop.f32.mrf.mxu0
        %v477 = vadd.f32 0.0, %v476
        %478 = vmatmul.bf16.gmra.mxu0 %v433
        %v479 = vpop.f32.mrf.mxu0
        %v480 = vadd.f32 0.0, %v479
        %v481 = vpop.f32.mrf.mxu0
        %v482 = vadd.f32 0.0, %v481
        %483 = vdwg.mxu0
        %v484 = vmax.f32 %v445, 0.0
        %v485 = vmax.f32 %v447, 0.0
        %v486 = vmax.f32 %v450, 0.0
        %v487 = vmax.f32 %v452, 0.0
        %v488 = vmax.f32 %v455, 0.0
        %v489 = vmax.f32 %v457, 0.0
        %v490 = vmax.f32 %v460, 0.0
        %v491 = vmax.f32 %v462, 0.0
        %v492 = vmax.f32 %v465, 0.0
        %v493 = vmax.f32 %v467, 0.0
        %v494 = vmax.f32 %v470, 0.0
        %v495 = vmax.f32 %v472, 0.0
        %v496 = vmax.f32 %v475, 0.0
        %v497 = vmax.f32 %v477, 0.0
        %v498 = vmax.f32 %v480, 0.0
        %v499 = vmax.f32 %v482, 0.0
        %v500 = vsel %vm410, %v484, 0.0
        %v501 = vsel %vm410, %v485, 0.0
        %v502 = vadd.f32 %v500, %v501
        %v503 = vrot.slane %v502, 4
        %v504 = vadd.f32 %v502, %v503
        %v505 = vrot.slane %v504, 2
        %v506 = vadd.f32 %v504, %v505
        %v507 = vrot.slane %v506, 1
        %v508 = vadd.f32 %v506, %v507
        %v509 = vsel %vm410, %v486, 0.0
        %v510 = vsel %vm410, %v487, 0.0
        %v511 = vadd.f32 %v509, %v510
        %v512 = vrot.slane %v511, 4
        %v513 = vadd.f32 %v511, %v512
        %v514 = vrot.slane %v513, 2
        %v515 = vadd.f32 %v513, %v514
        %v516 = vrot.slane %v515, 1
        %v517 = vadd.f32 %v515, %v516
        %v518 = vsel %vm410, %v488, 0.0
        %v519 = vsel %vm410, %v489, 0.0
        %v520 = vadd.f32 %v518, %v519
        %v521 = vrot.slane %v520, 4
        %v522 = vadd.f32 %v520, %v521
        %v523 = vrot.slane %v522, 2
        %v524 = vadd.f32 %v522, %v523
        %v525 = vrot.slane %v524, 1
        %v526 = vadd.f32 %v524, %v525
        %v527 = vsel %vm410, %v490, 0.0
        %v528 = vsel %vm410, %v491, 0.0
        %v529 = vadd.f32 %v527, %v528
        %v530 = vrot.slane %v529, 4
        %v531 = vadd.f32 %v529, %v530
        %v532 = vrot.slane %v531, 2
        %v533 = vadd.f32 %v531, %v532
        %v534 = vrot.slane %v533, 1
        %v535 = vadd.f32 %v533, %v534
        %v536 = vsel %vm410, %v492, 0.0
        %v537 = vsel %vm410, %v493, 0.0
        %v538 = vadd.f32 %v536, %v537
        %v539 = vrot.slane %v538, 4
        %v540 = vadd.f32 %v538, %v539
        %v541 = vrot.slane %v540, 2
        %v542 = vadd.f32 %v540, %v541
        %v543 = vrot.slane %v542, 1
        %v544 = vadd.f32 %v542, %v543
        %v545 = vsel %vm410, %v494, 0.0
        %v546 = vsel %vm410, %v495, 0.0
        %v547 = vadd.f32 %v545, %v546
        %v548 = vrot.slane %v547, 4
        %v549 = vadd.f32 %v547, %v548
        %v550 = vrot.slane %v549, 2
        %v551 = vadd.f32 %v549, %v550
        %v552 = vrot.slane %v551, 1
        %v553 = vadd.f32 %v551, %v552
        %v554 = vsel %vm410, %v496, 0.0
        %v555 = vsel %vm410, %v497, 0.0
        %v556 = vadd.f32 %v554, %v555
        %v557 = vrot.slane %v556, 4
        %v558 = vadd.f32 %v556, %v557
        %v559 = vrot.slane %v558, 2
        %v560 = vadd.f32 %v558, %v559
        %v561 = vrot.slane %v560, 1
        %v562 = vadd.f32 %v560, %v561
        %v563 = vsel %vm410, %v498, 0.0
        %v564 = vsel %vm410, %v499, 0.0
        %v565 = vadd.f32 %v563, %v564
        %v566 = vrot.slane %v565, 4
        %v567 = vadd.f32 %v565, %v566
        %v568 = vrot.slane %v567, 2
        %v569 = vadd.f32 %v567, %v568
        %v570 = vrot.slane %v569, 1
        %v571 = vadd.f32 %v569, %v570
        %v572 = vrcp.pop 16.0
        %v573 = vmul.f32 16.0, %v572
        %v574 = vsub.f32 1.0, %v573
        %v575 = vmul.f32 %v572, %v574
        %v576 = vadd.f32 %v572, %v575
        %vm577 = vweird.f32 %v572
        %v578 = vsel %vm577, %v572, %v576
        %v579 = vmul.f32 %v508, %v578
        %v580 = vmul.f32 %v517, %v578
        %v581 = vmul.f32 %v526, %v578
        %v582 = vmul.f32 %v535, %v578
        %v583 = vmul.f32 %v544, %v578
        %v584 = vmul.f32 %v553, %v578
        %v585 = vmul.f32 %v562, %v578
        %v586 = vmul.f32 %v571, %v578
        %s587 = smul.u32 %s21, 8
        %vm596 = vcmask 1041409
        %v597 = vsel %vm596, %v580, %v579
        %vm598 = vcmask 1042434
        %v599 = vsel %vm598, %v581, %v597
        %vm600 = vcmask 1043459
        %v601 = vsel %vm600, %v582, %v599
        %vm602 = vcmask 1044484
        %v603 = vsel %vm602, %v583, %v601
        %vm604 = vcmask 1045509
        %v605 = vsel %vm604, %v584, %v603
        %vm606 = vcmask 1046534
        %v607 = vsel %vm606, %v585, %v605
        %vm608 = vcmask 1047559
        %v609 = vsel %vm608, %v586, %v607
        %s611 = scalar_lea.vmem [#allocation2], %s587
        %612 = vst.msk [vmem:[%s611] sm:$0xff] %vm410, %v609
        %p613 = scmp.eq.s32.totalorder %s21, 1
        // Predicated region
        $region57: #{dsbn_barlow_twins.1} parent=55 // pred_check
          %p614 = pneg %p613
        $region58: #{dsbn_barlow_twins.1} parent=55 // pred_check_branch
          %616 = sbr.rel (%p614) target = $region60
        $region59: #{dsbn_barlow_twins.1} parent=55 // pred_region
          %v617 = vld [vmem:[#allocation2] sm:$0xff]
          %v618 = vld [vmem:[#allocation2 + $0x8] sm:$0xff]
          %v619 = vld [vmem:[%s2] sm:$0xff]
          %v620 = vld [vmem:[%s2 + $0x8] sm:$0xff]
          %v621 = vld [vmem:[%s2 + $0x10] sm:$0xff]
          %v622 = vld [vmem:[%s2 + $0x18] sm:$0xff]
          %v623 = vld [vmem:[%s2 + $0x20] sm:$0xff]
          %v624 = vld [vmem:[%s2 + $0x28] sm:$0xff]
          %v625 = vld [vmem:[%s2 + $0x30] sm:$0xff]
          %v626 = vld [vmem:[%s2 + $0x38] sm:$0xff]
          %v628 = vsel %vm410, %v617, 0
          %v631 = vsel %vm410, %v618, 0
          %633 = vmatpush.msra.mxu0 0.0
          %634 = vmatpush.msra.mxu0 0.0
          %635 = vmatpush.msra.mxu0 0.0
          %636 = vmatpush.msra.mxu0 0.0
          %637 = vmatpush.msra.mxu0 0.0
          %638 = vmatpush.msra.mxu0 0.0
          %639 = vmatpush.msra.mxu0 0.0
          %640 = vmatpush.msra.mxu0 0.0
          %641 = vmatpush.msra.mxu0 %v626
          %642 = vmatpush.msra.mxu0 %v625
          %643 = vmatpush.msra.mxu0 %v624
          %644 = vmatpush.msra.mxu0 %v623
          %645 = vmatpush.msra.mxu0 %v622
          %646 = vmatpush.msra.mxu0 %v621
          %647 = vmatpush.msra.mxu0 %v620
          %648 = vmatpush.msra.mxu0 %v619
          %649 = vmatmul.f32.gmra.mxu0 %v628
          %v650 = vpop.f32.mrf.mxu0
          %v651 = vadd.f32 0.0, %v650
          %652 = vmatmul.f32.gmra.mxu0 %v631
          %v653 = vpop.f32.mrf.mxu0
          %v654 = vadd.f32 0.0, %v653
          %655 = vdwg.mxu0
          %v656 = vld [vmem:[%s3] sm:$0x1]
          %v657 = vld [vmem:[%s4] sm:$0x1]
          %vm658 = vcmask 261120
          %v659 = vsel %vm658, %v651, 0.0
          %v660 = vrot.slane %v659, 4
          %v661 = vadd.f32 %v659, %v660
          %v662 = vrot.slane %v661, 2
          %v663 = vadd.f32 %v661, %v662
          %v664 = vrot.slane %v663, 1
          %v665 = vadd.f32 %v663, %v664
          %v666 = vsel %vm658, %v654, 0.0
          %v667 = vrot.slane %v666, 4
          %v668 = vadd.f32 %v666, %v667
          %v669 = vrot.slane %v668, 2
          %v670 = vadd.f32 %v668, %v669
          %v671 = vrot.slane %v670, 1
          %v672 = vadd.f32 %v670, %v671
          %v673 = vrcp.pop 8.0
          %v674 = vmul.f32 8.0, %v673
          %v675 = vsub.f32 1.0, %v674
          %v676 = vmul.f32 %v673, %v675
          %v677 = vadd.f32 %v673, %v676
          %vm678 = vweird.f32 %v673
          %v679 = vsel %vm678, %v673, %v677
          %v680 = vmul.f32 %v665, %v679
          %v681 = vmul.f32 %v672, %v679
          %v682 = vmul.f32 %v651, %v651
          %v683 = vmul.f32 %v654, %v654
          %v684 = vsel %vm658, %v682, 0.0
          %v685 = vrot.slane %v684, 4
          %v686 = vadd.f32 %v684, %v685
          %v687 = vrot.slane %v686, 2
          %v688 = vadd.f32 %v686, %v687
          %v689 = vrot.slane %v688, 1
          %v690 = vadd.f32 %v688, %v689
          %v691 = vsel %vm658, %v683, 0.0
          %v692 = vrot.slane %v691, 4
          %v693 = vadd.f32 %v691, %v692
          %v694 = vrot.slane %v693, 2
          %v695 = vadd.f32 %v693, %v694
          %v696 = vrot.slane %v695, 1
          %v697 = vadd.f32 %v695, %v696
          %v698 = vmul.f32 %v690, %v679
          %v699 = vmul.f32 %v697, %v679
          %v700 = vsub.f32 %v651, %v680
          %v701 = vsub.f32 %v654, %v681
          %v702 = vmul.f32 %v680, %v680
          %v703 = vmul.f32 %v681, %v681
          %v704 = vsub.f32 %v698, %v702
          %v705 = vsub.f32 %v699, %v703
          %v706 = vadd.f32 %v704, 1e-05
          %v707 = vadd.f32 %v705, 1e-05
          %v708 = vrsqrt.pop %v706
          %v709 = vmul.f32 %v708, %v706
          %v710 = vmul.f32 %v709, %v708
          %v711 = vmul.f32 0.5, %v710
          %v712 = vsub.f32 1.5, %v711
          %v713 = vmul.f32 %v708, %v712
          %vm714 = vweird.f32 %v706
          %vm715 = vweird.f32 %v708
          %vm716 = vmor %vm714, %vm715
          %v717 = vsel %vm716, %v708, %v713
          %v718 = vrsqrt.pop %v707
          %v719 = vmul.f32 %v718, %v707
          %v720 = vmul.f32 %v719, %v718
          %v721 = vmul.f32 0.5, %v720
          %v722 = vsub.f32 1.5, %v721
          %v723 = vmul.f32 %v718, %v722
          %vm724 = vweird.f32 %v707
          %vm725 = vweird.f32 %v718
          %vm726 = vmor %vm724, %vm725
          %v727 = vsel %vm726, %v718, %v723
          %v728 = vmul.f32 %v700, %v717
          %v729 = vmul.f32 %v701, %v727
          %v731 = vperm.slane %v656, 0
          %v733 = vmul.f32 %v728, %v731
          %v734 = vmul.f32 %v729, %v731
          %v736 = vperm.slane %v657, 0
          %v738 = vadd.f32 %v733, %v736
          %v739 = vadd.f32 %v734, %v736
          %v740 = vmax.f32 %v738, 0.0
          %v741 = vmax.f32 %v739, 0.0
          %v742 = vld [vmem:[%s5] sm:$0xff]
          %v743 = vld [vmem:[%s5 + $0x8] sm:$0xff]
          %v744 = vld [vmem:[%s5 + $0x10] sm:$0xff]
          %v745 = vld [vmem:[%s5 + $0x18] sm:$0xff]
          %v747 = vsel %vm658, %v740, 0
          %v750 = vsel %vm658, %v741, 0
          %752 = vmatpush.msra.mxu0 0.0
          %753 = vmatpush.msra.mxu0 0.0
          %754 = vmatpush.msra.mxu0 0.0
          %755 = vmatpush.msra.mxu0 0.0
          %756 = vmatpush.msra.mxu0 0.0
          %757 = vmatpush.msra.mxu0 0.0
          %758 = vmatpush.msra.mxu0 0.0
          %759 = vmatpush.msra.mxu0 0.0
          %760 = vmatpush.msra.mxu0 0.0
          %761 = vmatpush.msra.mxu0 0.0
          %762 = vmatpush.msra.mxu0 0.0
          %763 = vmatpush.msra.mxu0 0.0
          %764 = vmatpush.msra.mxu0 %v745
          %765 = vmatpush.msra.mxu0 %v744
          %766 = vmatpush.msra.mxu0 %v743
          %767 = vmatpush.msra.mxu0 %v742
          %768 = vmatmul.f32.gmra.mxu0 %v747
          %v769 = vpop.f32.mrf.mxu0
          %v770 = vadd.f32 0.0, %v769
          %771 = vmatmul.f32.gmra.mxu0 %v750
          %v772 = vpop.f32.mrf.mxu0
          %v773 = vadd.f32 0.0, %v772
          %774 = vdwg.mxu0
          %v775 = vld [vmem:[%s6] sm:$0x1]
          %v776 = vld [vmem:[%s7] sm:$0x1]
          %v777 = vsel %vm658, %v770, 0.0
          %v778 = vrot.slane %v777, 4
          %v779 = vadd.f32 %v777, %v778
          %v780 = vrot.slane %v779, 2
          %v781 = vadd.f32 %v779, %v780
          %v782 = vrot.slane %v781, 1
          %v783 = vadd.f32 %v781, %v782
          %v784 = vsel %vm658, %v773, 0.0
          %v785 = vrot.slane %v784, 4
          %v786 = vadd.f32 %v784, %v785
          %v787 = vrot.slane %v786, 2
          %v788 = vadd.f32 %v786, %v787
          %v789 = vrot.slane %v788, 1
          %v790 = vadd.f32 %v788, %v789
          %v791 = vmul.f32 %v783, %v679
          %v792 = vmul.f32 %v790, %v679
          %v793 = vmul.f32 %v770, %v770
          %v794 = vmul.f32 %v773, %v773
          %v795 = vsel %vm658, %v793, 0.0
          %v796 = vrot.slane %v795, 4
          %v797 = vadd.f32 %v795, %v796
          %v798 = vrot.slane %v797, 2
          %v799 = vadd.f32 %v797, %v798
          %v800 = vrot.slane %v799, 1
          %v801 = vadd.f32 %v799, %v800
          %v802 = vsel %vm658, %v794, 0.0
          %v803 = vrot.slane %v802, 4
          %v804 = vadd.f32 %v802, %v803
          %v805 = vrot.slane %v804, 2
          %v806 = vadd.f32 %v804, %v805
          %v807 = vrot.slane %v806, 1
          %v808 = vadd.f32 %v806, %v807
          %v809 = vmul.f32 %v801, %v679
          %v810 = vmul.f32 %v808, %v679
          %v811 = vsub.f32 %v770, %v791
          %v812 = vsub.f32 %v773, %v792
          %v813 = vmul.f32 %v791, %v791
          %v814 = vmul.f32 %v792, %v792
          %v815 = vsub.f32 %v809, %v813
          %v816 = vsub.f32 %v810, %v814
          %v817 = vadd.f32 %v815, 1e-05
          %v818 = vadd.f32 %v816, 1e-05
          %v819 = vrsqrt.pop %v817
          %v820 = vmul.f32 %v819, %v817
          %v821 = vmul.f32 %v820, %v819
          %v822 = vmul.f32 0.5, %v821
          %v823 = vsub.f32 1.5, %v822
          %v824 = vmul.f32 %v819, %v823
          %vm825 = vweird.f32 %v817
          %vm826 = vweird.f32 %v819
          %vm827 = vmor %vm825, %vm826
          %v828 = vsel %vm827, %v819, %v824
          %v829 = vrsqrt.pop %v818
          %v830 = vmul.f32 %v829, %v818
          %v831 = vmul.f32 %v830, %v829
          %v832 = vmul.f32 0.5, %v831
          %v833 = vsub.f32 1.5, %v832
          %v834 = vmul.f32 %v829, %v833
          %vm835 = vweird.f32 %v818
          %vm836 = vweird.f32 %v829
          %vm837 = vmor %vm835, %vm836
          %v838 = vsel %vm837, %v829, %v834
          %v839 = vmul.f32 %v811, %v828
          %v840 = vmul.f32 %v812, %v838
          %v842 = vperm.slane %v775, 0
          %v844 = vmul.f32 %v839, %v842
          %v845 = vmul.f32 %v840, %v842
          %v847 = vperm.slane %v776, 0
          %v849 = vadd.f32 %v844, %v847
          %v850 = vadd.f32 %v845, %v847
          %v851 = vmax.f32 %v849, 0.0
          %v852 = vmax.f32 %v850, 0.0
          %v853 = vld [vmem:[%s8] sm:$0xff]
          %v854 = vld [vmem:[%s8 + $0x8] sm:$0xff]
          %v855 = vld [vmem:[%s8 + $0x10] sm:$0xff]
          %v856 = vld [vmem:[%s8 + $0x18] sm:$0xff]
          %v858 = vsel %vm658, %v851, 0
          %v861 = vsel %vm658, %v852, 0
          %863 = vmatpush.msra.mxu0 0.0
          %864 = vmatpush.msra.mxu0 0.0
          %865 = vmatpush.msra.mxu0 0.0
          %866 = vmatpush.msra.mxu0 0.0
          %867 = vmatpush.msra.mxu0 0.0
          %868 = vmatpush.msra.mxu0 0.0
          %869 = vmatpush.msra.mxu0 0.0
          %870 = vmatpush.msra.mxu0 0.0
          %871 = vmatpush.msra.mxu0 0.0
          %872 = vmatpush.msra.mxu0 0.0
          %873 = vmatpush.msra.mxu0 0.0
          %874 = vmatpush.msra.mxu0 0.0
          %875 = vmatpush.msra.mxu0 %v856
          %876 = vmatpush.msra.mxu0 %v855
          %877 = vmatpush.msra.mxu0 %v854
          %878 = vmatpush.msra.mxu0 %v853
          %879 = vmatmul.f32.gmra.mxu0 %v858
          %v880 = vpop.f32.mrf.mxu0
          %v881 = vadd.f32 0.0, %v880
          %882 = vmatmul.f32.gmra.mxu0 %v861
          %v883 = vpop.f32.mrf.mxu0
          %v884 = vadd.f32 0.0, %v883
          %885 = vdwg.mxu0
          %v886 = vsel %vm658, %v881, 0.0
          %v887 = vrot.slane %v886, 4
          %v888 = vadd.f32 %v886, %v887
          %v889 = vrot.slane %v888, 2
          %v890 = vadd.f32 %v888, %v889
          %v891 = vrot.slane %v890, 1
          %v892 = vadd.f32 %v890, %v891
          %v893 = vsel %vm658, %v884, 0.0
          %v894 = vrot.slane %v893, 4
          %v895 = vadd.f32 %v893, %v894
          %v896 = vrot.slane %v895, 2
          %v897 = vadd.f32 %v895, %v896
          %v898 = vrot.slane %v897, 1
          %v899 = vadd.f32 %v897, %v898
          %v900 = vmul.f32 %v892, %v679
          %v901 = vmul.f32 %v899, %v679
          %v902 = vmul.f32 %v881, %v881
          %v903 = vmul.f32 %v884, %v884
          %v904 = vsel %vm658, %v902, 0.0
          %v905 = vrot.slane %v904, 4
          %v906 = vadd.f32 %v904, %v905
          %v907 = vrot.slane %v906, 2
          %v908 = vadd.f32 %v906, %v907
          %v909 = vrot.slane %v908, 1
          %v910 = vadd.f32 %v908, %v909
          %v911 = vsel %vm658, %v903, 0.0
          %v912 = vrot.slane %v911, 4
          %v913 = vadd.f32 %v911, %v912
          %v914 = vrot.slane %v913, 2
          %v915 = vadd.f32 %v913, %v914
          %v916 = vrot.slane %v915, 1
          %v917 = vadd.f32 %v915, %v916
          %v918 = vmul.f32 %v910, %v679
          %v919 = vmul.f32 %v917, %v679
          %v920 = vsub.f32 %v881, %v900
          %v921 = vsub.f32 %v884, %v901
          %v922 = vmul.f32 %v900, %v900
          %v923 = vmul.f32 %v901, %v901
          %v924 = vsub.f32 %v918, %v922
          %v925 = vsub.f32 %v919, %v923
          %v926 = vadd.f32 %v924, 1e-05
          %v927 = vadd.f32 %v925, 1e-05
          %v928 = vrsqrt.pop %v926
          %v929 = vmul.f32 %v928, %v926
          %v930 = vmul.f32 %v929, %v928
          %v931 = vmul.f32 0.5, %v930
          %v932 = vsub.f32 1.5, %v931
          %v933 = vmul.f32 %v928, %v932
          %vm934 = vweird.f32 %v926
          %vm935 = vweird.f32 %v928
          %vm936 = vmor %vm934, %vm935
          %v937 = vsel %vm936, %v928, %v933
          %v938 = vrsqrt.pop %v927
          %v939 = vmul.f32 %v938, %v927
          %v940 = vmul.f32 %v939, %v938
          %v941 = vmul.f32 0.5, %v940
          %v942 = vsub.f32 1.5, %v941
          %v943 = vmul.f32 %v938, %v942
          %vm944 = vweird.f32 %v927
          %vm945 = vweird.f32 %v938
          %vm946 = vmor %vm944, %vm945
          %v947 = vsel %vm946, %v938, %v943
          %v948 = vmul.f32 %v920, %v937
          %v949 = vmul.f32 %v921, %v947
          %950 = vxpose.xlu0.b32.start [1/16] %v948, 128
          %951 = vxpose.xlu0.b32.cont [2/16] 0.0, 128
          %952 = vxpose.xlu0.b32.cont [3/16] 0.0, 128
          %953 = vxpose.xlu0.b32.cont [4/16] 0.0, 128
          %954 = vxpose.xlu0.b32.cont [5/16] 0.0, 128
          %955 = vxpose.xlu0.b32.cont [6/16] 0.0, 128
          %956 = vxpose.xlu0.b32.cont [7/16] 0.0, 128
          %957 = vxpose.xlu0.b32.cont [8/16] 0.0, 128
          %958 = vxpose.xlu0.b32.cont [9/16] 0.0, 128
          %959 = vxpose.xlu0.b32.cont [10/16] 0.0, 128
          %960 = vxpose.xlu0.b32.cont [11/16] 0.0, 128
          %961 = vxpose.xlu0.b32.cont [12/16] 0.0, 128
          %962 = vxpose.xlu0.b32.cont [13/16] 0.0, 128
          %963 = vxpose.xlu0.b32.cont [14/16] 0.0, 128
          %964 = vxpose.xlu0.b32.cont [15/16] 0.0, 128
          %965 = vxpose.xlu0.b32.end [16/16] 0.0, 128
          %v966 = vpop.trf.xlu0
          %v967 = vpop.trf.xlu0
          %v968 = vpop.trf.xlu0
          %v969 = vpop.trf.xlu0
          %v970 = vpop.trf.xlu0
          %v971 = vpop.trf.xlu0
          %v972 = vpop.trf.xlu0
          %v973 = vpop.trf.xlu0
          %v974 = vpop.trf.xlu0
          %v975 = vpop.trf.xlu0
          %v976 = vpop.trf.xlu0
          %v977 = vpop.trf.xlu0
          %v978 = vpop.trf.xlu0
          %v979 = vpop.trf.xlu0
          %v980 = vpop.trf.xlu0
          %v981 = vpop.trf.xlu0
          %vm982 = vcmask 64512
          %v984 = vsel %vm982, %v966, 0
          %v987 = vsel %vm982, %v967, 0
          %v990 = vsel %vm982, %v968, 0
          %v993 = vsel %vm982, %v969, 0
          %995 = vmatpush.msra.mxu0 0.0
          %996 = vmatpush.msra.mxu0 0.0
          %997 = vmatpush.msra.mxu0 0.0
          %998 = vmatpush.msra.mxu0 0.0
          %999 = vmatpush.msra.mxu0 0.0
          %1000 = vmatpush.msra.mxu0 0.0
          %1001 = vmatpush.msra.mxu0 0.0
          %1002 = vmatpush.msra.mxu0 0.0
          %1003 = vmatpush.msra.mxu0 0.0
          %1004 = vmatpush.msra.mxu0 0.0
          %1005 = vmatpush.msra.mxu0 0.0
          %1006 = vmatpush.msra.mxu0 0.0
          %1007 = vmatpush.msra.mxu0 0.0
          %1008 = vmatpush.msra.mxu0 0.0
          %1009 = vmatpush.msra.mxu0 0.0
          %1010 = vmatpush.msra.mxu0 %v949
          %1011 = vmatmul.f32.gmra.mxu0 %v984
          %v1012 = vpop.f32.mrf.mxu0
          %v1013 = vadd.f32 0.0, %v1012
          %1014 = vmatmul.f32.gmra.mxu0 %v987
          %v1015 = vpop.f32.mrf.mxu0
          %v1016 = vadd.f32 0.0, %v1015
          %1017 = vmatmul.f32.gmra.mxu0 %v990
          %v1018 = vpop.f32.mrf.mxu0
          %v1019 = vadd.f32 0.0, %v1018
          %1020 = vmatmul.f32.gmra.mxu0 %v993
          %v1021 = vpop.f32.mrf.mxu0
          %v1022 = vadd.f32 0.0, %v1021
          %1023 = vdwg.mxu0
          %v1024 = vmul.f32 %v1013, %v679
          %v1025 = vmul.f32 %v1016, %v679
          %v1026 = vmul.f32 %v1019, %v679
          %v1027 = vmul.f32 %v1022, %v679
          %v1028 = vlaneseq
          %v1029 = vshrl.u32 %v1028, 7
          %v1030 = vadd.s32 %v1029, 8
          %v1031 = vadd.s32 %v1029, 16
          %v1032 = vadd.s32 %v1029, 24
          %v1033 = vlaneseq
          %v1034 = vand.u32 %v1033, 127
          %vm1035 = vcmp.eq.s32.totalorder %v1029, %v1034
          %vm1036 = vcmp.eq.s32.totalorder %v1030, %v1034
          %vm1037 = vcmp.eq.s32.totalorder %v1031, %v1034
          %vm1038 = vcmp.eq.s32.totalorder %v1032, %v1034
          %v1039 = vmul.f32 %v1024, %v1024
          %v1040 = vmul.f32 %v1025, %v1025
          %v1041 = vmul.f32 %v1026, %v1026
          %v1042 = vmul.f32 %v1027, %v1027
          %v1043 = vsel %vm658, %v1039, 0.0
          %v1044 = vsel %vm658, %v1040, 0.0
          %v1045 = vadd.f32 %v1043, %v1044
          %v1046 = vsel %vm658, %v1041, 0.0
          %v1047 = vadd.f32 %v1045, %v1046
          %v1048 = vsel %vm658, %v1042, 0.0
          %v1049 = vadd.f32 %v1047, %v1048
          %1050 = vadd.xlane.f32.xlu0 %v1049
          %v1051 = vpop.xlane.xlu0 %1050
          %v1052 = vrot.slane %v1051, 4
          %v1053 = vadd.f32 %v1051, %v1052
          %v1054 = vrot.slane %v1053, 2
          %v1055 = vadd.f32 %v1053, %v1054
          %v1056 = vrot.slane %v1055, 1
          %v1057 = vadd.f32 %v1055, %v1056
          %s1058 = vtos %v1057
          %v1059 = vsel %vm1035, %v1039, 0.0
          %v1060 = vsel %vm1036, %v1040, 0.0
          %v1061 = vsel %vm1037, %v1041, 0.0
          %v1062 = vsel %vm1038, %v1042, 0.0
          %v1063 = vsel %vm658, %v1059, 0.0
          %v1064 = vsel %vm658, %v1060, 0.0
          %v1065 = vadd.f32 %v1063, %v1064
          %v1066 = vsel %vm658, %v1061, 0.0
          %v1067 = vadd.f32 %v1065, %v1066
          %v1068 = vsel %vm658, %v1062, 0.0
          %v1069 = vadd.f32 %v1067, %v1068
          %1070 = vadd.xlane.f32.xlu0 %v1069
          %v1071 = vpop.xlane.xlu0 %1070
          %v1072 = vrot.slane %v1071, 4
          %v1073 = vadd.f32 %v1071, %v1072
          %v1074 = vrot.slane %v1073, 2
          %v1075 = vadd.f32 %v1073, %v1074
          %v1076 = vrot.slane %v1075, 1
          %v1077 = vadd.f32 %v1075, %v1076
          %s1078 = vtos %v1077
          %v1079 = vsel %vm1035, %v1024, 0.0
          %v1080 = vsel %vm1036, %v1025, 0.0
          %v1081 = vsel %vm1037, %v1026, 0.0
          %v1082 = vsel %vm1038, %v1027, 0.0
          %v1083 = vsel %vm658, %v1079, 0.0
          %v1084 = vsel %vm658, %v1080, 0.0
          %v1085 = vadd.f32 %v1083, %v1084
          %v1086 = vsel %vm658, %v1081, 0.0
          %v1087 = vadd.f32 %v1085, %v1086
          %v1088 = vsel %vm658, %v1082, 0.0
          %v1089 = vadd.f32 %v1087, %v1088
          %1090 = vadd.xlane.f32.xlu0 %v1089
          %v1091 = vpop.xlane.xlu0 %1090
          %v1092 = vrot.slane %v1091, 4
          %v1093 = vadd.f32 %v1091, %v1092
          %v1094 = vrot.slane %v1093, 2
          %v1095 = vadd.f32 %v1093, %v1094
          %v1096 = vrot.slane %v1095, 1
          %v1097 = vadd.f32 %v1095, %v1096
          %s1098 = vtos %v1097
          %s1099 = smul.f32 %s1098, 2.0
          %s1100 = ssub.f32 %s1078, %s1099
          %s1101 = sadd.f32 %s1100, 32.0
          %s1102 = ssub.f32 %s1058, %s1078
          %s1103 = smul.f32 %s1102, 0.0051
          %s1104 = sadd.f32 %s1101, %s1103
          %s1105 = scalar_lea.smem [#allocation3], 0
          %1106 = sst [smem:[%s1105]] %s1104
        $region60: #{dsbn_barlow_twins.1} parent=55 // pred_fallthru
          _
        // Predicated region
        $region61: #{dsbn_barlow_twins.1} parent=55 // pred_check
          %p1107 = pneg %p228
        $region62: #{dsbn_barlow_twins.1} parent=55 // pred_check_branch
          %1109 = sbr.rel (%p1107) target = $region64
        $region63: #{dsbn_barlow_twins.1} parent=55 // pred_region
          %1111 = vsyncadd [#allocation4], 0
          %s1113 = sshll.u32 %s9, 4
          %s1114 = int_to_ptr.hbm [resolvable:$true] %s1113
          %1116 = dma.smem_to_hbm [#allocation3], 16, %s1114, [#allocation4]
        $region64: #{dsbn_barlow_twins.1} parent=55 // pred_fallthru
          _
        // Predicated region
        $region65: #{dsbn_barlow_twins.1} parent=55 // pred_check
          %p1117 = pneg %p228
        $region66: #{dsbn_barlow_twins.1} parent=55 // pred_check_branch
          %1119 = sbr.rel (%p1117) target = $region68
        $region67: #{dsbn_barlow_twins.1} parent=55 // pred_region
          %1121 = dma.done [#allocation4], 16
        $region68: #{dsbn_barlow_twins.1} parent=55 // pred_fallthru
          _
        %1122 = sfence
      $region56: #{dsbn_barlow_twins.1} parent=5 // pred_fallthru
        _
      %p1123 = scmp.le.s32.totalorder 2, %s16
      // Predicated region
      $region69: #{dsbn_barlow_twins.1} parent=5 // pred_check
        %p1124 = pneg %p1123
      $region70: #{dsbn_barlow_twins.1} parent=5 // pred_check_branch
        %1126 = sbr.rel (%p1124) target = $region72
      $region71: #{dsbn_barlow_twins.1} parent=5 // pred_region
        %s1127 = ssub.s32 %s16, 2
      $region72: #{dsbn_barlow_twins.1} parent=5 // pred_fallthru
        _
    $region6: #{dsbn_barlow_twins.1} parent=1 // loop_footer
      %s20 = sadd.s32 1, %s16
    $region7: #{dsbn_barlow_twins.1} parent=1 // loop_footer_branch
      %15 = sbr.rel target = $region3
    $region8: #{dsbn_barlow_twins.1} parent=1 // loop_exit
      _
    %1128 = vsyncpa [#allocation4], 1
    %s1129 = scalar_lea.sflag [#allocation4], 1
    %1130 = vsyncpa %s1129, 1

</llo_original>
